<compile_context>
chip_gen: v6e
topology: v6e:2x2x1
jax: 0.10.0
libtpu: 0.0.40
codegen_flags: <defaults>
</compile_context>

<pallas_src>
import jax
import jax.numpy as jnp
from jax.experimental import pallas as pl
from jax.experimental.pallas import tpu as pltpu


def residual_block_kernel(x_ref, w1_ref, b1_ref, w2_ref, b2_ref, o_ref):
    # Keep an f32 copy of x for the residual add; bf16 only at the MXU boundary.
    x = x_ref[...].astype(jnp.float32)
    xb = x.astype(jnp.bfloat16)

    # fc1: (tb, D) @ (D, D), f32 accumulation on the MXU, bias add in f32.
    h = jnp.dot(xb, w1_ref[...], preferred_element_type=jnp.float32) + b1_ref[...]

    # SiLU in f32: exp goes to the EUP slot, mul to the VALU (hidden under MXU).
    h = h * jax.nn.sigmoid(h)

    # fc2: cast activations to bf16 for the MXU, accumulate in f32.
    r = jnp.dot(h.astype(jnp.bfloat16), w2_ref[...],
                preferred_element_type=jnp.float32) + b2_ref[...]

    # dropout (eval mode) == identity; residual add in f32.
    o_ref[...] = (x + r).astype(o_ref.dtype)


def _choose_tb(B):
    # Prefer MXU-friendly row tiles while keeping >=2 grid steps when B allows,
    # so the x/out DMA pipelines and the batch axis can shard across TCs.
    for cand in (512, 256, 128, 64, 32, 16, 8):
        if B % cand == 0 and B // cand >= 2:
            return cand
    return B


def residual_block(x, w1, b1, w2, b2, *, tb=None):
    """x: (B, D). w1, w2: (D, D) laid out as (in, out). b1, b2: (D,)."""
    B, D = x.shape
    if tb is None:
        tb = _choose_tb(B)
    assert B % tb == 0, (B, tb)

    # Pre-cast weights once outside the kernel: bf16 MXU operands, half the
    # HBM traffic and half the resident VMEM footprint.
    w1c = w1.astype(jnp.bfloat16)
    w2c = w2.astype(jnp.bfloat16)
    b1_2d = b1.astype(jnp.float32).reshape(1, D)
    b2_2d = b2.astype(jnp.float32).reshape(1, D)

    itemsize = jnp.dtype(x.dtype).itemsize

    # VMEM budget: single-buffered bf16 weights + double-buffered x/out tiles
    # + f32 in-kernel temporaries, with headroom; clamped so the limit is safe
    # on v7x's 64 MiB VMEM while still raising the 32 MiB default when needed.
    vmem_need = (2 * D * D * 2                 # w1 + w2 (bf16, Buffered(1))
                 + 2 * 2 * D * 4               # biases (f32)
                 + 2 * 2 * tb * D * itemsize   # x + out tiles, double-buffered
                 + 4 * tb * D * 4)             # f32 temporaries (x, h, r, acc)
    vmem_limit = int(min(56 << 20, max(32 << 20, int(vmem_need * 1.5))))

    cost = pl.CostEstimate(
        flops=4 * B * D * D,                   # two (B,D)@(D,D) matmuls
        transcendentals=B * D,                 # sigmoid exp
        bytes_accessed=(2 * B * D * itemsize   # x in + out
                        + 2 * D * D * 2        # bf16 weights
                        + 2 * D * 4),          # biases
    )

    resident = pl.Buffered(1)  # constant index_map -> no second buffer needed
    grid = (B // tb,)
    return pl.pallas_call(
        residual_block_kernel,
        out_shape=jax.ShapeDtypeStruct((B, D), x.dtype),
        grid_spec=pltpu.PrefetchScalarGridSpec(
            num_scalar_prefetch=0,
            grid=grid,
            in_specs=[
                pl.BlockSpec((tb, D), lambda i: (i, 0)),                       # x tile
                pl.BlockSpec((D, D), lambda i: (0, 0), pipeline_mode=resident),  # w1
                pl.BlockSpec((1, D), lambda i: (0, 0), pipeline_mode=resident),  # b1
                pl.BlockSpec((D, D), lambda i: (0, 0), pipeline_mode=resident),  # w2
                pl.BlockSpec((1, D), lambda i: (0, 0), pipeline_mode=resident),  # b2
            ],
            out_specs=pl.BlockSpec((tb, D), lambda i: (i, 0)),
        ),
        compiler_params=pltpu.CompilerParams(
            dimension_semantics=("parallel",),
            vmem_limit_bytes=vmem_limit,
        ),
        cost_estimate=cost,
    )(x, w1c, b1_2d, w2c, b2_2d)


def reference(x, w1, b1, w2, b2):
    h = x @ w1 + b1
    h = h * jax.nn.sigmoid(h)
    r = h @ w2 + b2
    return x + r


if __name__ == "__main__":
    key = jax.random.PRNGKey(0)

    def init(B, D, k):
        kx, kw1, kb1, kw2, kb2 = jax.random.split(k, 5)
        x = jax.random.normal(kx, (B, D), dtype=jnp.float32)
        bound = 1.0 / (D ** 0.5)  # PyTorch nn.Linear default init range
        u = lambda kk, s: jax.random.uniform(kk, s, minval=-bound, maxval=bound,
                                             dtype=jnp.float32)
        return x, u(kw1, (D, D)), u(kb1, (D,)), u(kw2, (D, D)), u(kb2, (D,))

    k1, k2 = jax.random.split(key)

    # Primary small shape consistent with the module: (batch=8, dim=32).
    x, w1, b1, w2, b2 = init(8, 32, k1)
    out = jax.block_until_ready(residual_block(x, w1, b1, w2, b2))
    ref = reference(x, w1, b1, w2, b2)
    # bf16 MXU operands -> loosened tolerance vs the f32 reference.
    assert jnp.allclose(out, ref, atol=3e-2, rtol=3e-2), "mismatch (B=8, D=32)"

    # Secondary check: multi-step batch grid (pipelined, megacore-shardable),
    # lane-dense D=128 output, tb=128 tiles.
    x, w1, b1, w2, b2 = init(256, 128, k2)
    out = jax.block_until_ready(residual_block(x, w1, b1, w2, b2))
    ref = reference(x, w1, b1, w2, b2)
    assert jnp.allclose(out, ref, atol=3e-2, rtol=3e-2), "mismatch (B=256, D=128)"

    print("KERNEL_OK")
</pallas_src>

<mosaic_0001>
module attributes {stable_mosaic.version = 11 : i64} {
  func.func @residual_block_kernel(%arg0: i32, %arg1: memref<8x32xf32, #tpu.memory_space<vmem>>, %arg2: memref<32x32xbf16, #tpu.memory_space<vmem>>, %arg3: memref<1x32xf32, #tpu.memory_space<vmem>>, %arg4: memref<32x32xbf16, #tpu.memory_space<vmem>>, %arg5: memref<1x32xf32, #tpu.memory_space<vmem>>, %arg6: memref<8x32xf32, #tpu.memory_space<vmem>>) attributes {dimension_semantics = [#tpu.dimension_semantics<parallel>], iteration_bounds = array<i64: 1>, scalar_prefetch = 0 : i64, scratch_operands = 0 : i64, tpu.core_type = #tpu.core_type<tc>, window_params = [{transform_indices = @transform_0, window_bounds = array<i64: 8, 32>}, {pipeline_mode = #tpu.pipeline_mode<synchronous>, transform_indices = @transform_1, window_bounds = array<i64: 32, 32>}, {pipeline_mode = #tpu.pipeline_mode<synchronous>, transform_indices = @transform_2, window_bounds = array<i64: 1, 32>}, {pipeline_mode = #tpu.pipeline_mode<synchronous>, transform_indices = @transform_3, window_bounds = array<i64: 32, 32>}, {pipeline_mode = #tpu.pipeline_mode<synchronous>, transform_indices = @transform_4, window_bounds = array<i64: 1, 32>}, {transform_indices = @transform_5, window_bounds = array<i64: 8, 32>}]} {
    %c0 = arith.constant 0 : index
    %c0_0 = arith.constant 0 : index
    %0 = vector.load %arg1[%c0, %c0_0] : memref<8x32xf32, #tpu.memory_space<vmem>>, vector<8x32xf32>
    %1 = arith.truncf %0 : vector<8x32xf32> to vector<8x32xbf16>
    %c0_1 = arith.constant 0 : index
    %c0_2 = arith.constant 0 : index
    %2 = vector.load %arg2[%c0_1, %c0_2] : memref<32x32xbf16, #tpu.memory_space<vmem>>, vector<32x32xbf16>
    %cst = arith.constant dense<0.000000e+00> : vector<8x32xf32>
    %3 = tpu.matmul %1, %2, %cst {dimension_numbers = #tpu.dot_dimension_numbers<[1], [0], [0], [1], [0, 0, 1, 1], [], []>} : vector<8x32xbf16>, vector<32x32xbf16>, vector<8x32xf32> -> vector<8x32xf32>
    %c0_3 = arith.constant 0 : index
    %c0_4 = arith.constant 0 : index
    %4 = vector.load %arg3[%c0_3, %c0_4] : memref<1x32xf32, #tpu.memory_space<vmem>>, vector<1x32xf32>
    %5 = vector.broadcast %4 : vector<1x32xf32> to vector<8x32xf32>
    %6 = arith.addf %3, %5 : vector<8x32xf32>
    %7 = arith.negf %6 : vector<8x32xf32>
    %8 = math.exp %7 : vector<8x32xf32>
    %cst_5 = arith.constant 1.000000e+00 : f32
    %9 = vector.broadcast %cst_5 : f32 to vector<8x32xf32>
    %10 = arith.addf %9, %8 : vector<8x32xf32>
    %11 = arith.divf %9, %10 : vector<8x32xf32>
    %12 = arith.mulf %6, %11 : vector<8x32xf32>
    %13 = arith.truncf %12 : vector<8x32xf32> to vector<8x32xbf16>
    %c0_6 = arith.constant 0 : index
    %c0_7 = arith.constant 0 : index
    %14 = vector.load %arg4[%c0_6, %c0_7] : memref<32x32xbf16, #tpu.memory_space<vmem>>, vector<32x32xbf16>
    %cst_8 = arith.constant dense<0.000000e+00> : vector<8x32xf32>
    %15 = tpu.matmul %13, %14, %cst_8 {dimension_numbers = #tpu.dot_dimension_numbers<[1], [0], [0], [1], [0, 0, 1, 1], [], []>} : vector<8x32xbf16>, vector<32x32xbf16>, vector<8x32xf32> -> vector<8x32xf32>
    %c0_9 = arith.constant 0 : index
    %c0_10 = arith.constant 0 : index
    %16 = vector.load %arg5[%c0_9, %c0_10] : memref<1x32xf32, #tpu.memory_space<vmem>>, vector<1x32xf32>
    %17 = vector.broadcast %16 : vector<1x32xf32> to vector<8x32xf32>
    %18 = arith.addf %15, %17 : vector<8x32xf32>
    %19 = arith.addf %0, %18 : vector<8x32xf32>
    %c0_11 = arith.constant 0 : index
    %c0_12 = arith.constant 0 : index
    %20 = vector.load %arg6[%c0_11, %c0_12] : memref<8x32xf32, #tpu.memory_space<vmem>>, vector<8x32xf32>
    tpu.vector_store %arg6[%c0_11, %c0_12], %19 {strides = array<i32>} : memref<8x32xf32, #tpu.memory_space<vmem>>, vector<8x32xf32>,
    return
  }
  func.func @transform_0(%arg0: i32) -> (i32, i32) {
    %c0_i32 = arith.constant 0 : i32
    %c0_i32_0 = arith.constant 0 : i32
    return %arg0, %c0_i32 : i32, i32
  }
  func.func @transform_1(%arg0: i32) -> (i32, i32) {
    %c0_i32 = arith.constant 0 : i32
    %c0_i32_0 = arith.constant 0 : i32
    %c0_i32_1 = arith.constant 0 : i32
    return %c0_i32, %c0_i32_0 : i32, i32
  }
  func.func @transform_2(%arg0: i32) -> (i32, i32) {
    %c0_i32 = arith.constant 0 : i32
    %c0_i32_0 = arith.constant 0 : i32
    %c0_i32_1 = arith.constant 0 : i32
    return %c0_i32, %c0_i32_0 : i32, i32
  }
  func.func @transform_3(%arg0: i32) -> (i32, i32) {
    %c0_i32 = arith.constant 0 : i32
    %c0_i32_0 = arith.constant 0 : i32
    %c0_i32_1 = arith.constant 0 : i32
    return %c0_i32, %c0_i32_0 : i32, i32
  }
  func.func @transform_4(%arg0: i32) -> (i32, i32) {
    %c0_i32 = arith.constant 0 : i32
    %c0_i32_0 = arith.constant 0 : i32
    %c0_i32_1 = arith.constant 0 : i32
    return %c0_i32, %c0_i32_0 : i32, i32
  }
  func.func @transform_5(%arg0: i32) -> (i32, i32) {
    %c0_i32 = arith.constant 0 : i32
    %c0_i32_0 = arith.constant 0 : i32
    return %arg0, %c0_i32 : i32, i32
  }
}

</mosaic_0001>

<llo_original>
// kernel: tpu_custom_call.1
$region0: #{tpu_custom_call.1}
  #allocation0 [shape = 'u32[]', space=smem, size = 0x4, offset = 0x4, fixed_abs, tag = 'smem constant byte address 0x4 - core index']
  #allocation1 [shape = 'u32[144,128]{1,0:T(1,128)}', space=vmem, size = 0x12000, scoped, tag = 'internal scratch']
  %s0 = inlined_call_operand.hbm [shape: f32[8,32], index: 0, kind: input, shape index: {}]
  %s1 = inlined_call_operand.hbm [shape: bf16[32,32], index: 1, kind: input, shape index: {}]
  %s2 = inlined_call_operand.vmem [shape: f32[1,32], index: 2, kind: input, shape index: {}]
  %s3 = inlined_call_operand.hbm [shape: bf16[32,32], index: 3, kind: input, shape index: {}]
  %s4 = inlined_call_operand.vmem [shape: f32[1,32], index: 4, kind: input, shape index: {}]
  %s5 = inlined_call_operand.hbm [shape: f32[8,32], index: 5, kind: output, shape index: {}]
  %s6 = sld [smem:[#allocation0]]
  $region42: #{tpu_custom_call.1} parent=0
    _
  %s8 = ssub.s32 1, %s6
  %s9 = scalar_select 0, %s8, %s6
  $region1: #{tpu_custom_call.1} parent=0
    #allocation2 [shape = 'u8[4096]{0}', space=vmem, size = 0x1000, scoped, tag = 'input window, operand 0, single buffered']
    #allocation3 [shape = 's32[1]{0}', space=sflag, size = 0x4, scoped, tag = 'scoped memory for tpu_custom_call.1']
    #allocation4 [shape = 's32[1]{0}', space=sflag, size = 0x4, scoped, tag = 'scoped memory for tpu_custom_call.1']
    #allocation5 [shape = 'u8[8192]{0}', space=vmem, size = 0x2000, scoped, tag = 'input window, operand 1, single buffered']
    #allocation6 [shape = 's32[1]{0}', space=sflag, size = 0x4, scoped, tag = 'scoped memory for tpu_custom_call.1']
    #allocation7 [shape = 'u8[8192]{0}', space=vmem, size = 0x2000, scoped, tag = 'input window, operand 3, single buffered']
    #allocation8 [shape = 'u8[4096]{0}', space=vmem, size = 0x1000, scoped, tag = 'output window, operand 0, single buffered']
    %10 = vsyncpa [#allocation3], 0
    %11 = vsyncpa [#allocation6], 0
    %12 = vsyncpa [#allocation4], 0
    // Predicated region
    $region2: #{tpu_custom_call.1} parent=1 // pred_check
      _
    $region3: #{tpu_custom_call.1} parent=1 // pred_check_branch
      %14 = sbr.rel (0) target = $region5
    $region4: #{tpu_custom_call.1} parent=1 // pred_region
      %s16 = ssub.s32 128, 128
      %17 = vsyncadd [#allocation3], %s16
      %s19 = sshll.u32 [#allocation2], 4
      %s20 = int_to_ptr.vmem [resolvable:$true] %s19
      %22 = dma.hbm_to_vmem [thread:$0]  %s0, 128, %s20, [#allocation3]
    $region5: #{tpu_custom_call.1} parent=1 // pred_fallthru
      _
    // Predicated region
    $region6: #{tpu_custom_call.1} parent=1 // pred_check
      _
    $region7: #{tpu_custom_call.1} parent=1 // pred_check_branch
      %24 = sbr.rel (0) target = $region9
    $region8: #{tpu_custom_call.1} parent=1 // pred_region
      %s26 = ssub.s32 256, 256
      %27 = vsyncadd [#allocation6], %s26
      %s28 = sshll.u32 [#allocation5], 4
      %s29 = int_to_ptr.vmem [resolvable:$true] %s28
      %34 = dma.hbm_to_vmem [thread:$0]  %s1, 256, %s29, [#allocation6], 64, 64, 4
    $region9: #{tpu_custom_call.1} parent=1 // pred_fallthru
      _
    // Predicated region
    $region10: #{tpu_custom_call.1} parent=1 // pred_check
      _
    $region11: #{tpu_custom_call.1} parent=1 // pred_check_branch
      %36 = sbr.rel (0) target = $region13
    $region12: #{tpu_custom_call.1} parent=1 // pred_region
      _
    $region13: #{tpu_custom_call.1} parent=1 // pred_fallthru
      _
    // Predicated region
    $region14: #{tpu_custom_call.1} parent=1 // pred_check
      _
    $region15: #{tpu_custom_call.1} parent=1 // pred_check_branch
      %38 = sbr.rel (0) target = $region17
    $region16: #{tpu_custom_call.1} parent=1 // pred_region
      %s40 = ssub.s32 256, 256
      %41 = vsyncadd [#allocation6], %s40
      %s42 = sshll.u32 [#allocation7], 4
      %s43 = int_to_ptr.vmem [resolvable:$true] %s42
      %48 = dma.hbm_to_vmem [thread:$0]  %s3, 256, %s43, [#allocation6], 64, 64, 4
    $region17: #{tpu_custom_call.1} parent=1 // pred_fallthru
      _
    // Predicated region
    $region18: #{tpu_custom_call.1} parent=1 // pred_check
      _
    $region19: #{tpu_custom_call.1} parent=1 // pred_check_branch
      %50 = sbr.rel (0) target = $region21
    $region20: #{tpu_custom_call.1} parent=1 // pred_region
      _
    $region21: #{tpu_custom_call.1} parent=1 // pred_fallthru
      _
    // Predicated region
    $region22: #{tpu_custom_call.1} parent=1 // pred_check
      _
    $region23: #{tpu_custom_call.1} parent=1 // pred_check_branch
      %52 = sbr.rel (0) target = $region25
    $region24: #{tpu_custom_call.1} parent=1 // pred_region
      %53 = dma.done [#allocation3], 128
    $region25: #{tpu_custom_call.1} parent=1 // pred_fallthru
      _
    // Predicated region
    $region26: #{tpu_custom_call.1} parent=1 // pred_check
      _
    $region27: #{tpu_custom_call.1} parent=1 // pred_check_branch
      %55 = sbr.rel (0) target = $region29
    $region28: #{tpu_custom_call.1} parent=1 // pred_region
      %56 = dma.done [#allocation6], 256
    $region29: #{tpu_custom_call.1} parent=1 // pred_fallthru
      _
    // Predicated region
    $region30: #{tpu_custom_call.1} parent=1 // pred_check
      _
    $region31: #{tpu_custom_call.1} parent=1 // pred_check_branch
      %58 = sbr.rel (0) target = $region33
    $region32: #{tpu_custom_call.1} parent=1 // pred_region
      %59 = dma.done [#allocation6], 256
    $region33: #{tpu_custom_call.1} parent=1 // pred_fallthru
      _
    %v61 = vld [vmem:[#allocation2] sm:$0xff]
    %v62 = vpack.c.bf16 %v61, %v61
    %v63 = vld [vmem:[#allocation5] sm:$0xf]
    %v64 = vld [vmem:[#allocation5 + $0x4] sm:$0xf]
    %v65 = vld [vmem:[#allocation5 + $0x8] sm:$0xf]
    %v66 = vld [vmem:[#allocation5 + $0xc] sm:$0xf]
    %v67 = vld [vmem:[%s2] sm:$0x1]
    %v69 = vlaneseq
    %v70 = vshrl.u32 %v69, 7
    %v71 = vsub.s32 0, %v70
    %v72 = vrot.slane %v67, %v71
    %v78 = vunpack.c.l.b16 %v63
    %v79 = vunpack.c.l.b16 %v64
    %v80 = vunpack.c.l.b16 %v65
    %v81 = vunpack.c.l.b16 %v66
    %v82 = vpack.c.b16 %v79, %v78
    %v83 = vpack.c.b16 %v81, %v80
    %vm86 = vcmask 261120
    %v88 = vsel %vm86, %v62, 0
    %90 = vmatprep.subr.bf16.mxu0 0
    %91 = vmatpush1.bf16.msra.mxu0 0
    %92 = vmatprep.subr.bf16.mxu0 0
    %93 = vmatpush1.bf16.msra.mxu0 0
    %94 = vmatprep.subr.bf16.mxu0 0
    %95 = vmatpush1.bf16.msra.mxu0 0
    %96 = vmatprep.subr.bf16.mxu0 0
    %97 = vmatpush1.bf16.msra.mxu0 0
    %98 = vmatprep.subr.bf16.mxu0 0
    %99 = vmatpush1.bf16.msra.mxu0 0
    %100 = vmatprep.subr.bf16.mxu0 0
    %101 = vmatpush1.bf16.msra.mxu0 0
    %102 = vmatprep.subr.bf16.mxu0 0
    %103 = vmatpush1.bf16.msra.mxu0 %v83
    %104 = vmatprep.subr.bf16.mxu0 0
    %105 = vmatpush1.bf16.msra.mxu0 %v82
    %106 = vmatprep.subr.bf16.mxu0 0
    %107 = vmatpush2.bf16.msra.mxu0 0
    %108 = vmatprep.subr.bf16.mxu0 0
    %109 = vmatpush2.bf16.msra.mxu0 0
    %110 = vmatprep.subr.bf16.mxu0 0
    %111 = vmatpush2.bf16.msra.mxu0 0
    %112 = vmatprep.subr.bf16.mxu0 0
    %113 = vmatpush2.bf16.msra.mxu0 0
    %114 = vmatprep.subr.bf16.mxu0 0
    %115 = vmatpush2.bf16.msra.mxu0 0
    %116 = vmatprep.subr.bf16.mxu0 0
    %117 = vmatpush2.bf16.msra.mxu0 0
    %118 = vmatprep.subr.bf16.mxu0 0
    %119 = vmatpush2.bf16.msra.mxu0 0
    %120 = vmatprep.subr.bf16.mxu0 0
    %121 = vmatpush2.bf16.msra.mxu0 0
    %122 = vmatprep.mubr.bf16.mxu0 0
    %123 = vmatmul.mubr.bf16.gmra.mxu0 %v88
    %v124 = vpop.f32.mrf.mxu0
    %v125 = vadd.f32 %v72, %v124
    %v126 = vpop.f32.mrf.mxu0
    %v127 = vpop.f32.mrf.mxu0
    %v128 = vpop.f32.mrf.mxu0
    %129 = vdwg.mxu0
    %v130 = vxor.u32 %v125, 2147483648
    %v131 = vmul.f32 %v130, 1.442695
    %v132 = vpow.pop %v131
    %v133 = vadd.f32 %v132, 1.0
    %v134 = vrcp.pop %v133
    %v135 = vmul.f32 1.0, %v134
    %v136 = vmul.f32 %v125, %v135
    %v137 = vpack.c.bf16 %v136, %v136
    %v138 = vld [vmem:[#allocation7] sm:$0xf]
    %v139 = vld [vmem:[#allocation7 + $0x4] sm:$0xf]
    %v140 = vld [vmem:[#allocation7 + $0x8] sm:$0xf]
    %v141 = vld [vmem:[#allocation7 + $0xc] sm:$0xf]
    %v142 = vld [vmem:[%s4] sm:$0x1]
    %v144 = vlaneseq
    %v145 = vshrl.u32 %v144, 7
    %v146 = vsub.s32 0, %v145
    %v147 = vrot.slane %v142, %v146
    %v153 = vunpack.c.l.b16 %v138
    %v154 = vunpack.c.l.b16 %v139
    %v155 = vunpack.c.l.b16 %v140
    %v156 = vunpack.c.l.b16 %v141
    %v157 = vpack.c.b16 %v154, %v153
    %v158 = vpack.c.b16 %v156, %v155
    %v162 = vsel %vm86, %v137, 0
    %164 = vmatprep.subr.bf16.mxu0 0
    %165 = vmatpush1.bf16.msra.mxu0 0
    %166 = vmatprep.subr.bf16.mxu0 0
    %167 = vmatpush1.bf16.msra.mxu0 0
    %168 = vmatprep.subr.bf16.mxu0 0
    %169 = vmatpush1.bf16.msra.mxu0 0
    %170 = vmatprep.subr.bf16.mxu0 0
    %171 = vmatpush1.bf16.msra.mxu0 0
    %172 = vmatprep.subr.bf16.mxu0 0
    %173 = vmatpush1.bf16.msra.mxu0 0
    %174 = vmatprep.subr.bf16.mxu0 0
    %175 = vmatpush1.bf16.msra.mxu0 0
    %176 = vmatprep.subr.bf16.mxu0 0
    %177 = vmatpush1.bf16.msra.mxu0 %v158
    %178 = vmatprep.subr.bf16.mxu0 0
    %179 = vmatpush1.bf16.msra.mxu0 %v157
    %180 = vmatprep.subr.bf16.mxu0 0
    %181 = vmatpush2.bf16.msra.mxu0 0
    %182 = vmatprep.subr.bf16.mxu0 0
    %183 = vmatpush2.bf16.msra.mxu0 0
    %184 = vmatprep.subr.bf16.mxu0 0
    %185 = vmatpush2.bf16.msra.mxu0 0
    %186 = vmatprep.subr.bf16.mxu0 0
    %187 = vmatpush2.bf16.msra.mxu0 0
    %188 = vmatprep.subr.bf16.mxu0 0
    %189 = vmatpush2.bf16.msra.mxu0 0
    %190 = vmatprep.subr.bf16.mxu0 0
    %191 = vmatpush2.bf16.msra.mxu0 0
    %192 = vmatprep.subr.bf16.mxu0 0
    %193 = vmatpush2.bf16.msra.mxu0 0
    %194 = vmatprep.subr.bf16.mxu0 0
    %195 = vmatpush2.bf16.msra.mxu0 0
    %196 = vmatprep.mubr.bf16.mxu0 0
    %197 = vmatmul.mubr.bf16.gmra.mxu0 %v162
    %v198 = vpop.f32.mrf.mxu0
    %v199 = vadd.f32 %v147, %v198
    %v200 = vpop.f32.mrf.mxu0
    %v201 = vpop.f32.mrf.mxu0
    %v202 = vpop.f32.mrf.mxu0
    %203 = vdwg.mxu0
    %v204 = vadd.f32 %v61, %v199
    %205 = vst.msk [vmem:[#allocation8] sm:$0xff] %vm86, %v204
    // Predicated region
    $region34: #{tpu_custom_call.1} parent=1 // pred_check
      _
    $region35: #{tpu_custom_call.1} parent=1 // pred_check_branch
      %207 = sbr.rel (0) target = $region37
    $region36: #{tpu_custom_call.1} parent=1 // pred_region
      %s209 = ssub.s32 128, 128
      %210 = vsyncadd [#allocation4], %s209
      %s212 = sshll.u32 [#allocation8], 4
      %s213 = int_to_ptr.vmem [resolvable:$true] %s212
      %215 = dma.vmem_to_hbm [thread:$0]  %s213, 128, %s5, [#allocation4]
    $region37: #{tpu_custom_call.1} parent=1 // pred_fallthru
      _
    // Predicated region
    $region38: #{tpu_custom_call.1} parent=1 // pred_check
      _
    $region39: #{tpu_custom_call.1} parent=1 // pred_check_branch
      %217 = sbr.rel (0) target = $region41
    $region40: #{tpu_custom_call.1} parent=1 // pred_region
      %218 = dma.done [#allocation4], 128
    $region41: #{tpu_custom_call.1} parent=1 // pred_fallthru
      _
    %219 = vsyncpa [#allocation3], 1
    %220 = vsyncpa [#allocation6], 1
    %221 = vsyncpa [#allocation4], 1

</llo_original>
